<compile_context>
chip_gen: v7x
topology: tpu7x:2x2x1
jax: 0.10.0
libtpu: 0.0.40
codegen_flags: <defaults>
</compile_context>

<pallas_src>
import functools

import jax
import jax.numpy as jnp
from jax.experimental import pallas as pl
from jax.experimental.pallas import tpu as pltpu

IN_DIM = 3
HID_DIM = 64
OUT_DIM = 128


def _round_up(x: int, m: int) -> int:
    return ((x + m - 1) // m) * m


def transl_enc_kernel(x_ref, w1_ref, b1_ref, w2_ref, b2_ref, o_ref):
    x = x_ref[...]          # (TB, 3)  f32
    w1 = w1_ref[...]        # (3, 64)  f32
    # First linear as 3 broadcast FMAs on the VPU (K=3 is too shallow for MXU).
    h = (x[:, 0:1] * w1[0:1, :]
         + x[:, 1:2] * w1[1:2, :]
         + x[:, 2:3] * w1[2:3, :]
         + b1_ref[...])     # (TB, 64)
    # ReLU
    h = jnp.maximum(h, 0.0)
    # Second linear on the MXU: (TB, 64) @ (64, 128) + (1, 128)
    y = jnp.dot(h, w2_ref[...], preferred_element_type=jnp.float32) + b2_ref[...]
    o_ref[...] = y.astype(o_ref.dtype)


@functools.partial(jax.jit, static_argnames=("tb",))
def transl_enc(x, w1, b1, w2, b2, *, tb: int = 2048):
    """x: (B, 3) f32. Returns (B, 128) in x.dtype (f32 math throughout)."""
    B = x.shape[0]
    # Batch tile: multiple of 8 (sublane), capped at `tb`.
    TB = min(tb, _round_up(B, 8))
    TB = max(TB, 8)
    Bp = _round_up(B, TB)
    if Bp != B:
        x = jnp.pad(x, ((0, Bp - B), (0, 0)))
    grid = (Bp // TB,)

    weight_bytes = (w1.size + b1.size + w2.size + b2.size) * 4
    cost = pl.CostEstimate(
        flops=2 * Bp * (IN_DIM * HID_DIM + HID_DIM * OUT_DIM),
        transcendentals=0,
        bytes_accessed=Bp * 4 * (IN_DIM + OUT_DIM) + weight_bytes,
    )

    out = pl.pallas_call(
        transl_enc_kernel,
        out_shape=jax.ShapeDtypeStruct((Bp, OUT_DIM), x.dtype),
        grid_spec=pltpu.PrefetchScalarGridSpec(
            num_scalar_prefetch=0,
            grid=grid,
            in_specs=[
                pl.BlockSpec((TB, IN_DIM), lambda i: (i, 0)),       # x: tiled over batch
                pl.BlockSpec((IN_DIM, HID_DIM), lambda i: (0, 0)),  # w1: resident
                pl.BlockSpec((1, HID_DIM), lambda i: (0, 0)),       # b1: resident
                pl.BlockSpec((HID_DIM, OUT_DIM), lambda i: (0, 0)), # w2: resident
                pl.BlockSpec((1, OUT_DIM), lambda i: (0, 0)),       # b2: resident
            ],
            out_specs=pl.BlockSpec((TB, OUT_DIM), lambda i: (i, 0)),
        ),
        compiler_params=pltpu.CompilerParams(
            dimension_semantics=("parallel",),   # megacore sharding on v7x
        ),
        cost_estimate=cost,
    )(x, w1, b1, w2, b2)

    return out[:B]


def init_params(key):
    # Deterministic init mimicking nn.Linear's uniform(-1/sqrt(fan_in), 1/sqrt(fan_in)).
    k1, k2, k3, k4 = jax.random.split(key, 4)
    bound1 = 1.0 / jnp.sqrt(IN_DIM)
    bound2 = 1.0 / jnp.sqrt(HID_DIM)
    w1 = jax.random.uniform(k1, (IN_DIM, HID_DIM), jnp.float32, -bound1, bound1)
    b1 = jax.random.uniform(k2, (1, HID_DIM), jnp.float32, -bound1, bound1)
    w2 = jax.random.uniform(k3, (HID_DIM, OUT_DIM), jnp.float32, -bound2, bound2)
    b2 = jax.random.uniform(k4, (1, OUT_DIM), jnp.float32, -bound2, bound2)
    return w1, b1, w2, b2


def _reference(x, w1, b1, w2, b2):
    return jnp.maximum(x @ w1 + b1, 0.0) @ w2 + b2


if __name__ == "__main__":
    key = jax.random.PRNGKey(0)
    kx, kx2, kp = jax.random.split(key, 3)
    w1, b1, w2, b2 = init_params(kp)

    # Small batch (single-tile path).
    B = 8
    x = jax.random.normal(kx, (B, IN_DIM), jnp.float32)
    out = jax.block_until_ready(transl_enc(x, w1, b1, w2, b2))
    ref = _reference(x, w1, b1, w2, b2)
    assert out.shape == (B, OUT_DIM)
    assert jnp.allclose(out, ref, atol=1e-5, rtol=1e-5)

    # Non-multiple-of-8 batch with a small tile to exercise the multi-tile
    # grid plus the padding / slicing path.
    B2 = 37
    x2 = jax.random.normal(kx2, (B2, IN_DIM), jnp.float32)
    out2 = jax.block_until_ready(transl_enc(x2, w1, b1, w2, b2, tb=16))
    ref2 = _reference(x2, w1, b1, w2, b2)
    assert out2.shape == (B2, OUT_DIM)
    assert jnp.allclose(out2, ref2, atol=1e-5, rtol=1e-5)

    print("KERNEL_OK")
</pallas_src>

<mosaic_0001>
module attributes {stable_mosaic.version = 11 : i64} {
  func.func @transl_enc_kernel(%arg0: i32, %arg1: memref<8x3xf32, #tpu.memory_space<vmem>>, %arg2: memref<3x64xf32, #tpu.memory_space<vmem>>, %arg3: memref<1x64xf32, #tpu.memory_space<vmem>>, %arg4: memref<64x128xf32, #tpu.memory_space<vmem>>, %arg5: memref<1x128xf32, #tpu.memory_space<vmem>>, %arg6: memref<8x128xf32, #tpu.memory_space<vmem>>) attributes {dimension_semantics = [#tpu.dimension_semantics<parallel>], iteration_bounds = array<i64: 1>, scalar_prefetch = 0 : i64, scratch_operands = 0 : i64, tpu.core_type = #tpu.core_type<tc>, window_params = [{transform_indices = @transform_0, window_bounds = array<i64: 8, 3>}, {pipeline_mode = #tpu.pipeline_mode<synchronous>, transform_indices = @transform_1, window_bounds = array<i64: 3, 64>}, {pipeline_mode = #tpu.pipeline_mode<synchronous>, transform_indices = @transform_2, window_bounds = array<i64: 1, 64>}, {pipeline_mode = #tpu.pipeline_mode<synchronous>, transform_indices = @transform_3, window_bounds = array<i64: 64, 128>}, {pipeline_mode = #tpu.pipeline_mode<synchronous>, transform_indices = @transform_4, window_bounds = array<i64: 1, 128>}, {transform_indices = @transform_5, window_bounds = array<i64: 8, 128>}]} {
    %c0 = arith.constant 0 : index
    %c0_0 = arith.constant 0 : index
    %0 = vector.load %arg1[%c0, %c0_0] : memref<8x3xf32, #tpu.memory_space<vmem>>, vector<8x3xf32>
    %c0_1 = arith.constant 0 : index
    %c0_2 = arith.constant 0 : index
    %1 = vector.load %arg2[%c0_1, %c0_2] : memref<3x64xf32, #tpu.memory_space<vmem>>, vector<3x64xf32>
    %2 = vector.extract_strided_slice %0 {offsets = [0, 0], sizes = [8, 1], strides = [1, 1]} : vector<8x3xf32> to vector<8x1xf32>
    %3 = vector.extract_strided_slice %1 {offsets = [0, 0], sizes = [1, 64], strides = [1, 1]} : vector<3x64xf32> to vector<1x64xf32>
    %4 = vector.broadcast %2 : vector<8x1xf32> to vector<8x64xf32>
    %5 = vector.broadcast %3 : vector<1x64xf32> to vector<8x64xf32>
    %6 = arith.mulf %4, %5 : vector<8x64xf32>
    %7 = vector.extract_strided_slice %0 {offsets = [0, 1], sizes = [8, 1], strides = [1, 1]} : vector<8x3xf32> to vector<8x1xf32>
    %8 = vector.extract_strided_slice %1 {offsets = [1, 0], sizes = [1, 64], strides = [1, 1]} : vector<3x64xf32> to vector<1x64xf32>
    %9 = vector.broadcast %7 : vector<8x1xf32> to vector<8x64xf32>
    %10 = vector.broadcast %8 : vector<1x64xf32> to vector<8x64xf32>
    %11 = arith.mulf %9, %10 : vector<8x64xf32>
    %12 = arith.addf %6, %11 : vector<8x64xf32>
    %13 = vector.extract_strided_slice %0 {offsets = [0, 2], sizes = [8, 1], strides = [1, 1]} : vector<8x3xf32> to vector<8x1xf32>
    %14 = vector.extract_strided_slice %1 {offsets = [2, 0], sizes = [1, 64], strides = [1, 1]} : vector<3x64xf32> to vector<1x64xf32>
    %15 = vector.broadcast %13 : vector<8x1xf32> to vector<8x64xf32>
    %16 = vector.broadcast %14 : vector<1x64xf32> to vector<8x64xf32>
    %17 = arith.mulf %15, %16 : vector<8x64xf32>
    %18 = arith.addf %12, %17 : vector<8x64xf32>
    %c0_3 = arith.constant 0 : index
    %c0_4 = arith.constant 0 : index
    %19 = vector.load %arg3[%c0_3, %c0_4] : memref<1x64xf32, #tpu.memory_space<vmem>>, vector<1x64xf32>
    %20 = vector.broadcast %19 : vector<1x64xf32> to vector<8x64xf32>
    %21 = arith.addf %18, %20 : vector<8x64xf32>
    %cst = arith.constant 0.000000e+00 : f32
    %22 = vector.broadcast %cst : f32 to vector<8x64xf32>
    %23 = arith.maximumf %21, %22 : vector<8x64xf32>
    %c0_5 = arith.constant 0 : index
    %c0_6 = arith.constant 0 : index
    %24 = vector.load %arg4[%c0_5, %c0_6] : memref<64x128xf32, #tpu.memory_space<vmem>>, vector<64x128xf32>
    %cst_7 = arith.constant dense<0.000000e+00> : vector<8x128xf32>
    %25 = tpu.matmul %23, %24, %cst_7 {dimension_numbers = #tpu.dot_dimension_numbers<[1], [0], [0], [1], [0, 0, 1, 1], [], []>} : vector<8x64xf32>, vector<64x128xf32>, vector<8x128xf32> -> vector<8x128xf32>
    %c0_8 = arith.constant 0 : index
    %c0_9 = arith.constant 0 : index
    %26 = vector.load %arg5[%c0_8, %c0_9] : memref<1x128xf32, #tpu.memory_space<vmem>>, vector<1x128xf32>
    %27 = vector.broadcast %26 : vector<1x128xf32> to vector<8x128xf32>
    %28 = arith.addf %25, %27 : vector<8x128xf32>
    %c0_10 = arith.constant 0 : index
    %c0_11 = arith.constant 0 : index
    %29 = vector.load %arg6[%c0_10, %c0_11] : memref<8x128xf32, #tpu.memory_space<vmem>>, vector<8x128xf32>
    tpu.vector_store %arg6[%c0_10, %c0_11], %28 {strides = array<i32>} : memref<8x128xf32, #tpu.memory_space<vmem>>, vector<8x128xf32>,
    return
  }
  func.func @transform_0(%arg0: i32) -> (i32, i32) {
    %c0_i32 = arith.constant 0 : i32
    %c0_i32_0 = arith.constant 0 : i32
    return %arg0, %c0_i32 : i32, i32
  }
  func.func @transform_1(%arg0: i32) -> (i32, i32) {
    %c0_i32 = arith.constant 0 : i32
    %c0_i32_0 = arith.constant 0 : i32
    %c0_i32_1 = arith.constant 0 : i32
    return %c0_i32, %c0_i32_0 : i32, i32
  }
  func.func @transform_2(%arg0: i32) -> (i32, i32) {
    %c0_i32 = arith.constant 0 : i32
    %c0_i32_0 = arith.constant 0 : i32
    %c0_i32_1 = arith.constant 0 : i32
    return %c0_i32, %c0_i32_0 : i32, i32
  }
  func.func @transform_3(%arg0: i32) -> (i32, i32) {
    %c0_i32 = arith.constant 0 : i32
    %c0_i32_0 = arith.constant 0 : i32
    %c0_i32_1 = arith.constant 0 : i32
    return %c0_i32, %c0_i32_0 : i32, i32
  }
  func.func @transform_4(%arg0: i32) -> (i32, i32) {
    %c0_i32 = arith.constant 0 : i32
    %c0_i32_0 = arith.constant 0 : i32
    %c0_i32_1 = arith.constant 0 : i32
    return %c0_i32, %c0_i32_0 : i32, i32
  }
  func.func @transform_5(%arg0: i32) -> (i32, i32) {
    %c0_i32 = arith.constant 0 : i32
    %c0_i32_0 = arith.constant 0 : i32
    return %arg0, %c0_i32 : i32, i32
  }
}

</mosaic_0001>

<llo_original>
// kernel: transl_enc.1
$region0: #{transl_enc.1}
  #allocation0 [shape = 'u32[]', space=smem, size = 0x4, offset = 0x4, fixed_abs, tag = 'smem constant byte address 0x4 - core index']
  #allocation1 [shape = 'u32[144,128]{1,0:T(1,128)}', space=vmem, size = 0x12000, scoped, tag = 'internal scratch']
  %s0 = inlined_call_operand.vmem [shape: f32[8,3], index: 0, kind: input, shape index: {}]
  %s1 = inlined_call_operand.vmem [shape: f32[3,64], index: 1, kind: input, shape index: {}]
  %s2 = inlined_call_operand.vmem [shape: f32[1,64], index: 2, kind: input, shape index: {}]
  %s3 = inlined_call_operand.hbm [shape: f32[64,128], index: 3, kind: input, shape index: {}]
  %s4 = inlined_call_operand.vmem [shape: f32[1,128], index: 4, kind: input, shape index: {}]
  %s5 = inlined_call_operand.hbm [shape: f32[8,128], index: 5, kind: output, shape index: {}]
  %s6 = sld [smem:[#allocation0]]
  $region34: #{transl_enc.1} parent=0
    _
  %s8 = ssub.s32 1, %s6
  %s9 = scalar_select 0, %s8, %s6
  $region1: #{transl_enc.1} parent=0
    #allocation2 [shape = 'u8[32768]{0}', space=vmem, size = 0x8000, scoped, tag = 'input window, operand 3, single buffered']
    #allocation3 [shape = 's32[1]{0}', space=sflag, size = 0x4, scoped, tag = 'scoped memory for transl_enc.1']
    #allocation4 [shape = 's32[1]{0}', space=sflag, size = 0x4, scoped, tag = 'scoped memory for transl_enc.1']
    #allocation5 [shape = 'u8[4096]{0}', space=vmem, size = 0x1000, scoped, tag = 'output window, operand 0, single buffered']
    %10 = vsyncpa [#allocation3], 0
    %11 = vsyncpa [#allocation4], 0
    // Predicated region
    $region2: #{transl_enc.1} parent=1 // pred_check
      _
    $region3: #{transl_enc.1} parent=1 // pred_check_branch
      %13 = sbr.rel (0) target = $region5
    $region4: #{transl_enc.1} parent=1 // pred_region
      _
    $region5: #{transl_enc.1} parent=1 // pred_fallthru
      _
    // Predicated region
    $region6: #{transl_enc.1} parent=1 // pred_check
      _
    $region7: #{transl_enc.1} parent=1 // pred_check_branch
      %15 = sbr.rel (0) target = $region9
    $region8: #{transl_enc.1} parent=1 // pred_region
      _
    $region9: #{transl_enc.1} parent=1 // pred_fallthru
      _
    // Predicated region
    $region10: #{transl_enc.1} parent=1 // pred_check
      _
    $region11: #{transl_enc.1} parent=1 // pred_check_branch
      %17 = sbr.rel (0) target = $region13
    $region12: #{transl_enc.1} parent=1 // pred_region
      _
    $region13: #{transl_enc.1} parent=1 // pred_fallthru
      _
    // Predicated region
    $region14: #{transl_enc.1} parent=1 // pred_check
      _
    $region15: #{transl_enc.1} parent=1 // pred_check_branch
      %19 = sbr.rel (0) target = $region17
    $region16: #{transl_enc.1} parent=1 // pred_region
      %s21 = ssub.s32 1024, 1024
      %22 = vsyncadd [#allocation3], %s21
      %s23 = sshll.u32 [#allocation2], 4
      %s24 = int_to_ptr.vmem [resolvable:$true] %s23
      %29 = dma.hbm_to_vmem [thread:$0]  %s3, 1024, %s24, [#allocation3], 128, 128, 8
    $region17: #{transl_enc.1} parent=1 // pred_fallthru
      _
    // Predicated region
    $region18: #{transl_enc.1} parent=1 // pred_check
      _
    $region19: #{transl_enc.1} parent=1 // pred_check_branch
      %31 = sbr.rel (0) target = $region21
    $region20: #{transl_enc.1} parent=1 // pred_region
      _
    $region21: #{transl_enc.1} parent=1 // pred_fallthru
      _
    // Predicated region
    $region22: #{transl_enc.1} parent=1 // pred_check
      _
    $region23: #{transl_enc.1} parent=1 // pred_check_branch
      %33 = sbr.rel (0) target = $region25
    $region24: #{transl_enc.1} parent=1 // pred_region
      %34 = dma.done [#allocation3], 1024
    $region25: #{transl_enc.1} parent=1 // pred_fallthru
      _
    %v35 = vld [vmem:[%s0] sm:$0xff]
    %v36 = vld [vmem:[%s1] sm:$0x7]
    %38 = vset.pattern.permute.xlu0 0
    %39 = vperm.xlu0 %38, %v35
    %v40 = vpop.permute.xlu0 %39
    %v42 = vlaneseq
    %v43 = vshrl.u32 %v42, 7
    %v44 = vsub.s32 0, %v43
    %v45 = vrot.slane %v36, %v44
    %v46 = vmul.f32 %v40, %v45
    %47 = vset.pattern.permute.xlu0 1
    %48 = vperm.xlu0 %47, %v35
    %v49 = vpop.permute.xlu0 %48
    %v51 = vlaneseq
    %v52 = vshrl.u32 %v51, 7
    %v53 = vsub.s32 1, %v52
    %v54 = vrot.slane %v36, %v53
    %v55 = vmul.f32 %v49, %v54
    %v56 = vadd.f32 %v46, %v55
    %57 = vset.pattern.permute.xlu0 2
    %58 = vperm.xlu0 %57, %v35
    %v59 = vpop.permute.xlu0 %58
    %v61 = vlaneseq
    %v62 = vshrl.u32 %v61, 7
    %v63 = vsub.s32 2, %v62
    %v64 = vrot.slane %v36, %v63
    %v65 = vmul.f32 %v59, %v64
    %v66 = vadd.f32 %v56, %v65
    %v67 = vld [vmem:[%s2] sm:$0x1]
    %v69 = vlaneseq
    %v70 = vshrl.u32 %v69, 7
    %v71 = vsub.s32 0, %v70
    %v72 = vrot.slane %v67, %v71
    %v74 = vadd.f32 %v66, %v72
    %v75 = vmax.f32 %v74, 0.0
    %v76 = vld [vmem:[#allocation2] sm:$0xff]
    %v77 = vld [vmem:[#allocation2 + $0x8] sm:$0xff]
    %v78 = vld [vmem:[#allocation2 + $0x10] sm:$0xff]
    %v79 = vld [vmem:[#allocation2 + $0x18] sm:$0xff]
    %v80 = vld [vmem:[#allocation2 + $0x20] sm:$0xff]
    %v81 = vld [vmem:[#allocation2 + $0x28] sm:$0xff]
    %v82 = vld [vmem:[#allocation2 + $0x30] sm:$0xff]
    %v83 = vld [vmem:[#allocation2 + $0x38] sm:$0xff]
    %v84 = vld [vmem:[%s4] sm:$0x1]
    %v86 = vlaneseq
    %v87 = vshrl.u32 %v86, 7
    %v88 = vsub.s32 0, %v87
    %v89 = vrot.slane %v84, %v88
    %vm91 = vcmask 523264
    %v93 = vsel %vm91, %v75, 0
    %95 = vmatprep.subr.mxu0 0.0
    %96 = vmatpush1.msra.mxu0 %v76
    %97 = vmatprep.subr.mxu0 0.0
    %98 = vmatpush1.msra.mxu0 %v77
    %99 = vmatprep.subr.mxu0 0.0
    %100 = vmatpush1.msra.mxu0 %v78
    %101 = vmatprep.subr.mxu0 0.0
    %102 = vmatpush1.msra.mxu0 %v79
    %103 = vmatprep.subr.mxu0 0.0
    %104 = vmatpush1.msra.mxu0 %v80
    %105 = vmatprep.subr.mxu0 0.0
    %106 = vmatpush1.msra.mxu0 %v81
    %107 = vmatprep.subr.mxu0 0.0
    %108 = vmatpush1.msra.mxu0 %v82
    %109 = vmatprep.subr.mxu0 0.0
    %110 = vmatpush1.msra.mxu0 %v83
    %111 = vmatprep.subr.mxu0 0.0
    %112 = vmatpush1.msra.mxu0 0.0
    %113 = vmatprep.subr.mxu0 0.0
    %114 = vmatpush1.msra.mxu0 0.0
    %115 = vmatprep.subr.mxu0 0.0
    %116 = vmatpush1.msra.mxu0 0.0
    %117 = vmatprep.subr.mxu0 0.0
    %118 = vmatpush1.msra.mxu0 0.0
    %119 = vmatprep.subr.mxu0 0.0
    %120 = vmatpush1.msra.mxu0 0.0
    %121 = vmatprep.subr.mxu0 0.0
    %122 = vmatpush1.msra.mxu0 0.0
    %123 = vmatprep.subr.mxu0 0.0
    %124 = vmatpush1.msra.mxu0 0.0
    %125 = vmatprep.subr.mxu0 0.0
    %126 = vmatpush1.msra.mxu0 0.0
    %127 = vmatprep.subr.mxu0 0.0
    %128 = vmatpush1.msra.mxu0 0.0
    %129 = vmatprep.subr.mxu0 0.0
    %130 = vmatpush1.msra.mxu0 0.0
    %131 = vmatprep.subr.mxu0 0.0
    %132 = vmatpush1.msra.mxu0 0.0
    %133 = vmatprep.subr.mxu0 0.0
    %134 = vmatpush1.msra.mxu0 0.0
    %135 = vmatprep.subr.mxu0 0.0
    %136 = vmatpush1.msra.mxu0 0.0
    %137 = vmatprep.subr.mxu0 0.0
    %138 = vmatpush1.msra.mxu0 0.0
    %139 = vmatprep.subr.mxu0 0.0
    %140 = vmatpush1.msra.mxu0 0.0
    %141 = vmatprep.subr.mxu0 0.0
    %142 = vmatpush1.msra.mxu0 0.0
    %143 = vmatprep.subr.mxu0 0.0
    %144 = vmatpush1.msra.mxu0 0.0
    %145 = vmatprep.subr.mxu0 0.0
    %146 = vmatpush1.msra.mxu0 0.0
    %147 = vmatprep.subr.mxu0 0.0
    %148 = vmatpush1.msra.mxu0 0.0
    %149 = vmatprep.subr.mxu0 0.0
    %150 = vmatpush1.msra.mxu0 0.0
    %151 = vmatprep.subr.mxu0 0.0
    %152 = vmatpush1.msra.mxu0 0.0
    %153 = vmatprep.subr.mxu0 0.0
    %154 = vmatpush1.msra.mxu0 0.0
    %155 = vmatprep.subr.mxu0 0.0
    %156 = vmatpush1.msra.mxu0 0.0
    %157 = vmatprep.subr.mxu0 0.0
    %158 = vmatpush1.msra.mxu0 0.0
    %159 = vmatprep.mubr.f32.mxu0 0.0
    %160 = vmatmul.mubr.f32.gmra.mrb[0].mxu0 %v93
    %v161 = vpop.f32.mrb[0].mxu0
    %v162 = vadd.f32 %v89, %v161
    %v163 = vpop.f32.mrb[0].mxu0
    %164 = vdwg.mxu0
    %165 = vst [vmem:[#allocation5] sm:$0xff] %v162
    // Predicated region
    $region26: #{transl_enc.1} parent=1 // pred_check
      _
    $region27: #{transl_enc.1} parent=1 // pred_check_branch
      %167 = sbr.rel (0) target = $region29
    $region28: #{transl_enc.1} parent=1 // pred_region
      %s169 = ssub.s32 128, 128
      %170 = vsyncadd [#allocation4], %s169
      %s172 = sshll.u32 [#allocation5], 4
      %s173 = int_to_ptr.vmem [resolvable:$true] %s172
      %175 = dma.vmem_to_hbm [thread:$0]  %s173, 128, %s5, [#allocation4]
    $region29: #{transl_enc.1} parent=1 // pred_fallthru
      _
    // Predicated region
    $region30: #{transl_enc.1} parent=1 // pred_check
      _
    $region31: #{transl_enc.1} parent=1 // pred_check_branch
      %177 = sbr.rel (0) target = $region33
    $region32: #{transl_enc.1} parent=1 // pred_region
      %178 = dma.done [#allocation4], 128
    $region33: #{transl_enc.1} parent=1 // pred_fallthru
      _
    %179 = vsyncpa [#allocation3], 1
    %180 = vsyncpa [#allocation4], 1

</llo_original>
